<compile_context>
chip_gen: v5e
topology: v5e:2x2
jax: 0.10.0
libtpu: 0.0.40
codegen_flags: <defaults>
</compile_context>

<pallas_src>
import functools
import math

import jax
import jax.numpy as jnp
from jax.experimental import pallas as pl
from jax.experimental.pallas import tpu as pltpu

LANE = 128
_VMEM_LIMIT = 32 * 1024 * 1024  # safe on v5e/v6e (128 MiB phys) and v7x (64 MiB phys)


def _round_up(x, m):
    return ((x + m - 1) // m) * m


def _pick_tile(n, pref, align):
    """Largest divisor of n that is <= pref and a multiple of `align`; else full dim n."""
    best = None
    t = align
    while t <= min(n, pref):
        if n % t == 0:
            best = t
        t += align
    return best if best is not None else n


def _elu(x):
    return jnp.where(x > 0, x, jnp.expm1(x))


# --------------------------------------------------------------------------------------
# Projection kernel:  h = x @ W_pad   and   f = h @ [a_src | a_dst]_pad
# One big (B*N, Fin) matmul -> MXU is fed large tiles instead of per-batch (N, Fin) slivers.
# --------------------------------------------------------------------------------------
def project_kernel(x_ref, w_ref, a2_ref, h_ref, f_ref):
    h = jnp.dot(x_ref[...], w_ref[...], preferred_element_type=jnp.float32)   # (Tm, Fpad)
    h_ref[...] = h
    # f[:, 0] = a_src . h[i],  f[:, 1] = a_dst . h[i]  (remaining 126 lanes are zero padding)
    f_ref[...] = jnp.dot(h, a2_ref[...], preferred_element_type=jnp.float32)  # (Tm, 128)
    # (the reference's h[h != h] = 0 NaN scrub is a no-op for finite dense math)


def project(x2d, w_pad, a2_pad, *, tm):
    m, fin = x2d.shape
    fpad = w_pad.shape[1]
    return pl.pallas_call(
        project_kernel,
        out_shape=(jax.ShapeDtypeStruct((m, fpad), jnp.float32),
                   jax.ShapeDtypeStruct((m, LANE), jnp.float32)),
        grid=(m // tm,),
        in_specs=[
            pl.BlockSpec((tm, fin), lambda i: (i, 0)),
            pl.BlockSpec((fin, fpad), lambda i: (0, 0)),
            pl.BlockSpec((fpad, LANE), lambda i: (0, 0)),
        ],
        out_specs=(
            pl.BlockSpec((tm, fpad), lambda i: (i, 0)),
            pl.BlockSpec((tm, LANE), lambda i: (i, 0)),
        ),
        compiler_params=pltpu.CompilerParams(
            dimension_semantics=("parallel",),
            vmem_limit_bytes=_VMEM_LIMIT),
    )(x2d, w_pad, a2_pad)


# --------------------------------------------------------------------------------------
# Tiled sparse-attention aggregation kernel (flash-style over the N x N edge mask).
# grid = (row_tile, col_tile), col_tile innermost / "arbitrary".
# The whole batch is blocked into each tile so adjacency tiles are reused across batch.
# --------------------------------------------------------------------------------------
def spgat_attention_kernel(fsrc_ref, fdst_ref, adj_ref, h_ref, out_ref,
                           rowsum_acc, numer_acc, *, alpha, apply_elu):
    ki = pl.program_id(1)

    @pl.when(ki == 0)
    def _():
        rowsum_acc[...] = jnp.zeros_like(rowsum_acc)
        numer_acc[...] = jnp.zeros_like(numer_acc)

    # S[b, i, j] = a_src.h[b,i] + a_dst.h[b,j]  for this (Tq, Tk) tile
    s = fsrc_ref[...] + fdst_ref[...]                       # (Bb,Tq,1)+(Bb,1,Tk) -> (Bb,Tq,Tk)
    lrelu = jnp.maximum(s, alpha * s)                       # leaky_relu (0 < alpha < 1)
    # E = exp(-leakyrelu(S)) on edges, 0 off-edge (adj is a 0/1 int8 mask)
    e = jnp.exp(-lrelu) * adj_ref[...].astype(jnp.float32)[None, :, :]
    # TODO(synk): dropout on edge_e is identity here (inference semantics).

    rowsum_acc[...] += jnp.sum(e, axis=-1, keepdims=True)   # running sparse rowsum
    numer_acc[...] += jnp.einsum('bqk,bkd->bqd', e, h_ref[...],
                                 preferred_element_type=jnp.float32)

    @pl.when(ki == pl.num_programs(1) - 1)
    def _():
        rowsum = rowsum_acc[...]
        denom = jnp.where(rowsum != 0.0, rowsum, 1.0)       # e_rowsum patch-up (empty rows / 1)
        h_prime = numer_acc[...] * pl.reciprocal(denom, approx=True)
        if apply_elu:
            h_prime = _elu(h_prime)
        out_ref[...] = h_prime


def spgat_attention(f_src, f_dst_row, adj_i8, h_pad, *, alpha, apply_elu, tq, tk):
    bb, n, fpad = h_pad.shape
    nq, nk = n // tq, n // tk
    kern = functools.partial(spgat_attention_kernel, alpha=alpha, apply_elu=apply_elu)
    return pl.pallas_call(
        kern,
        out_shape=jax.ShapeDtypeStruct((bb, n, fpad), jnp.float32),
        grid=(nq, nk),
        in_specs=[
            pl.BlockSpec((bb, tq, 1), lambda qi, ki: (0, qi, 0)),     # f_src row tile
            pl.BlockSpec((bb, 1, tk), lambda qi, ki: (0, 0, ki)),     # f_dst col tile (row-vector)
            pl.BlockSpec((tq, tk), lambda qi, ki: (qi, ki)),          # int8 edge mask tile
            pl.BlockSpec((bb, tk, fpad), lambda qi, ki: (0, ki, 0)),  # h col tile
        ],
        out_specs=pl.BlockSpec((bb, tq, fpad), lambda qi, ki: (0, qi, 0)),
        scratch_shapes=[
            pltpu.VMEM((bb, tq, 1), jnp.float32),     # running rowsum
            pltpu.VMEM((bb, tq, fpad), jnp.float32),  # running numerator (E @ h)
        ],
        compiler_params=pltpu.CompilerParams(
            dimension_semantics=("parallel", "arbitrary"),
            vmem_limit_bytes=_VMEM_LIMIT),
    )(f_src, f_dst_row, adj_i8, h_pad)


# --------------------------------------------------------------------------------------
# Epilogue: log_softmax over the NODE axis (dim=1 of (B, N, C)) — elu is already fused
# into the final attention layer's finalize step.
# --------------------------------------------------------------------------------------
def log_softmax_nodes_kernel(x_ref, o_ref):
    x = x_ref[0]                                            # (N, Cpad)
    m = jnp.max(x, axis=0, keepdims=True)
    lse = m + jnp.log(jnp.sum(jnp.exp(x - m), axis=0, keepdims=True))
    o_ref[0] = x - lse


def log_softmax_nodes(x):
    b, n, c = x.shape
    return pl.pallas_call(
        log_softmax_nodes_kernel,
        out_shape=jax.ShapeDtypeStruct((b, n, c), jnp.float32),
        grid=(b,),
        in_specs=[pl.BlockSpec((1, n, c), lambda i: (i, 0, 0))],
        out_specs=pl.BlockSpec((1, n, c), lambda i: (i, 0, 0)),
        compiler_params=pltpu.CompilerParams(
            dimension_semantics=("parallel",),
            vmem_limit_bytes=_VMEM_LIMIT),
    )(x)


# --------------------------------------------------------------------------------------
# One SpGraphAttentionLayer (padded to 128 lanes; padding columns stay exactly zero).
# --------------------------------------------------------------------------------------
def sp_gat_layer(x_pad, adj_i8, w, a, *, alpha, apply_elu, tq, tk):
    b, n, fin_pad = x_pad.shape
    fin, fout = w.shape
    fpad = _round_up(fout, LANE)

    # Zero-pad W / a so the MXU and all stores see 128-lane-dense tiles.
    w_pad = jnp.zeros((fin_pad, fpad), jnp.float32).at[:fin, :fout].set(w.astype(jnp.float32))
    a2 = jnp.zeros((fpad, LANE), jnp.float32)
    a2 = a2.at[:fout, 0].set(a[0, :fout].astype(jnp.float32))
    a2 = a2.at[:fout, 1].set(a[0, fout:].astype(jnp.float32))

    # One batched projection matmul over (B*N, Fin).
    x2d = x_pad.reshape(b * n, fin_pad)
    tm = _pick_tile(b * n, 256, 8)
    h2d, f2d = project(x2d, w_pad, a2, tm=tm)
    h_pad = h2d.reshape(b, n, fpad)
    f3 = f2d.reshape(b, n, LANE)
    f_src = f3[:, :, 0:1]                                   # (B, N, 1)
    f_dst_row = jnp.reshape(f3[:, :, 1], (b, 1, n))         # (B, 1, N): col-tile row-vectors

    return spgat_attention(f_src, f_dst_row, adj_i8, h_pad,
                           alpha=alpha, apply_elu=apply_elu, tq=tq, tk=tk)


def xavier_normal(key, shape, gain):
    # torch.nn.init.xavier_normal_ for a 2-D tensor (symmetric in fan_in / fan_out).
    fan_out, fan_in = shape
    std = gain * math.sqrt(2.0 / (fan_in + fan_out))
    return std * jax.random.normal(key, shape, dtype=jnp.float32)


def init_spgat_params(key, nfeat, nhid, nclass, nheads):
    gain = 1.414
    keys = jax.random.split(key, 2 * nheads + 2)
    attentions = []
    for h in range(nheads):
        w = xavier_normal(keys[2 * h], (nfeat, nhid), gain)
        a = xavier_normal(keys[2 * h + 1], (1, 2 * nhid), gain)
        attentions.append((w, a))
    out_w = xavier_normal(keys[-2], (nhid * nheads, nclass), gain)
    out_a = xavier_normal(keys[-1], (1, 2 * nclass), gain)
    return {"attentions": attentions, "out_W": out_w, "out_a": out_a}


def spgat_forward(x, adj, params, *, alpha, tq, tk):
    # TODO(synk): F.dropout (on features and on edge_e) is identity here (inference semantics).
    adj_i8 = (adj != 0).astype(jnp.int8)   # binarize once; nonzero pattern defines the edge set

    heads = [sp_gat_layer(x, adj_i8, w, a, alpha=alpha, apply_elu=True, tq=tq, tk=tk)
             for (w, a) in params["attentions"]]
    # matches torch.cat(..., dim=1); only type-correct for nheads == 1 (reference quirk)
    h1 = jnp.concatenate(heads, axis=1) if len(heads) > 1 else heads[0]

    # out_att (concat=False) with the subsequent F.elu fused into the kernel finalize.
    h2 = sp_gat_layer(h1, adj_i8, params["out_W"], params["out_a"],
                      alpha=alpha, apply_elu=True, tq=tq, tk=tk)

    out = log_softmax_nodes(h2)            # F.log_softmax over the node axis (dim=1)
    nclass = params["out_W"].shape[1]
    return out[:, :, :nclass]              # drop lane padding


if __name__ == "__main__":
    B, N = 2, 256
    nfeat, nhid, nclass, nheads = 16, 16, 8, 1
    alpha = 0.2

    key = jax.random.PRNGKey(0)
    k_x, k_adj, k_params = jax.random.split(key, 3)

    x = jax.random.normal(k_x, (B, N, nfeat), dtype=jnp.float32)
    # random sparse-ish adjacency with self-loops (shared across the batch)
    adj = (jax.random.uniform(k_adj, (N, N)) < 0.05).astype(jnp.float32)
    adj = jnp.maximum(adj, jnp.eye(N, dtype=jnp.float32))

    params = init_spgat_params(k_params, nfeat, nhid, nclass, nheads)

    # Tile sizes: row tiles aligned to 8 sublanes, column tiles aligned to 128 lanes
    # (fall back to the full dimension when N is small). N=256 -> a real 2x2 tile grid.
    tq = _pick_tile(N, 128, 8)
    tk = _pick_tile(N, 128, 128)

    out = spgat_forward(x, adj, params, alpha=alpha, tq=tq, tk=tk)
    out = jax.block_until_ready(out)
    assert out.shape == (B, N, nclass)
    assert bool(jnp.all(jnp.isfinite(out)))
    print("KERNEL_OK")
</pallas_src>

<mosaic_0001>
module attributes {stable_mosaic.version = 11 : i64} {
  func.func @project_kernel(%arg0: i32, %arg1: memref<256x16xf32, #tpu.memory_space<vmem>>, %arg2: memref<16x128xf32, #tpu.memory_space<vmem>>, %arg3: memref<128x128xf32, #tpu.memory_space<vmem>>, %arg4: memref<256x128xf32, #tpu.memory_space<vmem>>, %arg5: memref<256x128xf32, #tpu.memory_space<vmem>>) attributes {dimension_semantics = [#tpu.dimension_semantics<parallel>], iteration_bounds = array<i64: 2>, scalar_prefetch = 0 : i64, scratch_operands = 0 : i64, tpu.core_type = #tpu.core_type<tc>, window_params = [{transform_indices = @transform_0, window_bounds = array<i64: 256, 16>}, {pipeline_mode = #tpu.pipeline_mode<synchronous>, transform_indices = @transform_1, window_bounds = array<i64: 16, 128>}, {pipeline_mode = #tpu.pipeline_mode<synchronous>, transform_indices = @transform_2, window_bounds = array<i64: 128, 128>}, {transform_indices = @transform_3, window_bounds = array<i64: 256, 128>}, {transform_indices = @transform_4, window_bounds = array<i64: 256, 128>}]} {
    %c0 = arith.constant 0 : index
    %c0_0 = arith.constant 0 : index
    %0 = vector.load %arg1[%c0, %c0_0] : memref<256x16xf32, #tpu.memory_space<vmem>>, vector<256x16xf32>
    %c0_1 = arith.constant 0 : index
    %c0_2 = arith.constant 0 : index
    %1 = vector.load %arg2[%c0_1, %c0_2] : memref<16x128xf32, #tpu.memory_space<vmem>>, vector<16x128xf32>
    %cst = arith.constant dense<0.000000e+00> : vector<256x128xf32>
    %2 = tpu.matmul %0, %1, %cst {dimension_numbers = #tpu.dot_dimension_numbers<[1], [0], [0], [1], [0, 0, 1, 1], [], []>} : vector<256x16xf32>, vector<16x128xf32>, vector<256x128xf32> -> vector<256x128xf32>
    %c0_3 = arith.constant 0 : index
    %c0_4 = arith.constant 0 : index
    %3 = vector.load %arg4[%c0_3, %c0_4] : memref<256x128xf32, #tpu.memory_space<vmem>>, vector<256x128xf32>
    tpu.vector_store %arg4[%c0_3, %c0_4], %2 {strides = array<i32>} : memref<256x128xf32, #tpu.memory_space<vmem>>, vector<256x128xf32>,
    %c0_5 = arith.constant 0 : index
    %c0_6 = arith.constant 0 : index
    %4 = vector.load %arg3[%c0_5, %c0_6] : memref<128x128xf32, #tpu.memory_space<vmem>>, vector<128x128xf32>
    %cst_7 = arith.constant dense<0.000000e+00> : vector<256x128xf32>
    %5 = tpu.matmul %2, %4, %cst_7 {dimension_numbers = #tpu.dot_dimension_numbers<[1], [0], [0], [1], [0, 0, 1, 1], [], []>} : vector<256x128xf32>, vector<128x128xf32>, vector<256x128xf32> -> vector<256x128xf32>
    %c0_8 = arith.constant 0 : index
    %c0_9 = arith.constant 0 : index
    %6 = vector.load %arg5[%c0_8, %c0_9] : memref<256x128xf32, #tpu.memory_space<vmem>>, vector<256x128xf32>
    tpu.vector_store %arg5[%c0_8, %c0_9], %5 {strides = array<i32>} : memref<256x128xf32, #tpu.memory_space<vmem>>, vector<256x128xf32>,
    return
  }
  func.func @transform_0(%arg0: i32) -> (i32, i32) {
    %c0_i32 = arith.constant 0 : i32
    %c0_i32_0 = arith.constant 0 : i32
    return %arg0, %c0_i32 : i32, i32
  }
  func.func @transform_1(%arg0: i32) -> (i32, i32) {
    %c0_i32 = arith.constant 0 : i32
    %c0_i32_0 = arith.constant 0 : i32
    %c0_i32_1 = arith.constant 0 : i32
    return %c0_i32, %c0_i32_0 : i32, i32
  }
  func.func @transform_2(%arg0: i32) -> (i32, i32) {
    %c0_i32 = arith.constant 0 : i32
    %c0_i32_0 = arith.constant 0 : i32
    %c0_i32_1 = arith.constant 0 : i32
    return %c0_i32, %c0_i32_0 : i32, i32
  }
  func.func @transform_3(%arg0: i32) -> (i32, i32) {
    %c0_i32 = arith.constant 0 : i32
    %c0_i32_0 = arith.constant 0 : i32
    return %arg0, %c0_i32 : i32, i32
  }
  func.func @transform_4(%arg0: i32) -> (i32, i32) {
    %c0_i32 = arith.constant 0 : i32
    %c0_i32_0 = arith.constant 0 : i32
    return %arg0, %c0_i32 : i32, i32
  }
}

</mosaic_0001>

<llo_original>
// kernel: tpu_custom_call.1
$region0: #{tpu_custom_call.1}
  #allocation0 [shape = 'u32[]', space=smem, size = 0x4, offset = 0x4, fixed_abs, tag = 'smem constant byte address 0x4 - core index']
  #allocation1 [shape = 'u32[72,128]{1,0:T(1,128)}', space=vmem, size = 0x9000, scoped, tag = 'internal scratch']
  %s0 = inlined_call_operand.vmem [shape: f32[512,16], index: 0, kind: input, shape index: {}]
  %s1 = inlined_call_operand.vmem [shape: f32[16,128], index: 1, kind: input, shape index: {}]
  %s2 = inlined_call_operand.vmem [shape: f32[128,128], index: 2, kind: input, shape index: {}]
  %s3 = inlined_call_operand.hbm [shape: f32[512,128], index: 3, kind: output, shape index: {0}]
  %s4 = inlined_call_operand.hbm [shape: f32[512,128], index: 4, kind: output, shape index: {1}]
  %5 = xla_tuple %s3, %s4
  %s6 = sld [smem:[#allocation0]]
  $region53: #{tpu_custom_call.1} parent=0
    _
  %s8 = ssub.s32 1, %s6
  %s9 = scalar_select 0, %s8, %s6
  $region1: #{tpu_custom_call.1} parent=0
    #allocation2 [shape = 'u8[262144]{0}', space=vmem, size = 0x40000, scoped, tag = 'output window, operand 0']
    #allocation3 [shape = 's32[2]{0}', space=sflag, size = 0x8, scoped, tag = 'scoped memory for tpu_custom_call.1']
    #allocation4 [shape = 'u8[262144]{0}', space=vmem, size = 0x40000, scoped, tag = 'output window, operand 1']
    #allocation5 [shape = 's32[2]{0}', space=sflag, size = 0x8, scoped, tag = 'scoped memory for tpu_custom_call.1']
    %10 = vsyncpa [#allocation3], 0
    %s11 = scalar_lea.sflag [#allocation3], 1
    %12 = vsyncpa %s11, 0
    %13 = vsyncpa [#allocation5], 0
    %s14 = scalar_lea.sflag [#allocation5], 1
    %15 = vsyncpa %s14, 0
    loop: start=0, step=1, limit=4
    $region2: #{tpu_custom_call.1} parent=1 // loop_pre_header
      _
    $region3: #{tpu_custom_call.1} parent=1 // loop_header
      %s17 = sphi 0, %s21
      %p18 = scmp.ge.s32.totalorder %s17, 4
      %s27 = sphi 0, %s29
      %s30 = sphi 0, %s27
      %s31 = sphi 0, %s30
      %s47 = sphi 0, %s31
      %s51 = sphi 0, %s51
      %s53 = sphi 0, %s51
      %s54 = sphi 0, %s53
      %s68 = sphi 0, %s54
      %s72 = sphi 0, %s72
      %s74 = sphi 0, %s72
      %s75 = sphi 0, %s74
      %s89 = sphi 0, %s75
      %s95 = sphi 0, %s97
      %s98 = sphi 0, %s95
      %s99 = sphi 0, %s98
      %s115 = sphi 0, %s99
      %s121 = sphi 0, %s123
      %s124 = sphi 0, %s121
      %s125 = sphi 0, %s124
      %s141 = sphi 0, %s125
    $region4: #{tpu_custom_call.1} parent=1 // loop_header_branch
      %20 = sbr.rel (%p18) target = $region8
    $region5: #{tpu_custom_call.1} parent=1 // loop_body
      %s22 = ssub.s32 %s17, 1
      %s23 = ssub.s32 %s17, 2
      %s24 = sadd.s32 %s17, 1
      %s25 = ssub.s32 %s17, %s24
      %p26 = scmp.eq.s32.totalorder %s25, 0
      %s28 = sadd.s32 %s27, 1
      %s29 = scalar_select %p26, %s27, %s28
      %p32 = pneg %p26
      %p33 = scmp.eq.s32.totalorder %s17, 1
      %p34 = por %p32, %p33
      %p35 = scmp.ne.s32.totalorder %s27, %s30
      %p36 = scmp.eq.s32.totalorder %s17, 0
      %p37 = por %p35, %p36
      %p38 = scmp.ne.s32.totalorder %s27, %s30
      %p39 = scmp.eq.s32.totalorder %s22, 1
      %p40 = por %p38, %p39
      %p41 = scmp.ne.s32.totalorder %s30, %s31
      %p42 = scmp.eq.s32.totalorder %s22, 0
      %p43 = por %p41, %p42
      %p44 = scmp.ne.s32.totalorder %s30, %s31
      %p45 = scmp.eq.s32.totalorder %s23, 1
      %p46 = por %p44, %p45
      %p48 = scmp.ne.s32.totalorder %s31, %s47
      %p49 = scmp.eq.s32.totalorder %s23, 0
      %p50 = por %p48, %p49
      %s52 = sadd.s32 %s51, 1
      %p55 = scmp.eq.s32.totalorder %s17, 1
      %p56 = scmp.ne.s32.totalorder %s51, %s53
      %p57 = scmp.eq.s32.totalorder %s17, 0
      %p58 = por %p56, %p57
      %p59 = scmp.ne.s32.totalorder %s51, %s53
      %p60 = scmp.eq.s32.totalorder %s22, 1
      %p61 = por %p59, %p60
      %p62 = scmp.ne.s32.totalorder %s53, %s54
      %p63 = scmp.eq.s32.totalorder %s22, 0
      %p64 = por %p62, %p63
      %p65 = scmp.ne.s32.totalorder %s53, %s54
      %p66 = scmp.eq.s32.totalorder %s23, 1
      %p67 = por %p65, %p66
      %p69 = scmp.ne.s32.totalorder %s54, %s68
      %p70 = scmp.eq.s32.totalorder %s23, 0
      %p71 = por %p69, %p70
      %s73 = sadd.s32 %s72, 1
      %p76 = scmp.eq.s32.totalorder %s17, 1
      %p77 = scmp.ne.s32.totalorder %s72, %s74
      %p78 = scmp.eq.s32.totalorder %s17, 0
      %p79 = por %p77, %p78
      %p80 = scmp.ne.s32.totalorder %s72, %s74
      %p81 = scmp.eq.s32.totalorder %s22, 1
      %p82 = por %p80, %p81
      %p83 = scmp.ne.s32.totalorder %s74, %s75
      %p84 = scmp.eq.s32.totalorder %s22, 0
      %p85 = por %p83, %p84
      %p86 = scmp.ne.s32.totalorder %s74, %s75
      %p87 = scmp.eq.s32.totalorder %s23, 1
      %p88 = por %p86, %p87
      %p90 = scmp.ne.s32.totalorder %s75, %s89
      %p91 = scmp.eq.s32.totalorder %s23, 0
      %p92 = por %p90, %p91
      %s93 = ssub.s32 %s17, %s24
      %p94 = scmp.eq.s32.totalorder %s93, 0
      %s96 = sadd.s32 %s95, 1
      %s97 = scalar_select %p94, %s95, %s96
      %p100 = pneg %p94
      %p101 = scmp.eq.s32.totalorder %s17, 1
      %p102 = por %p100, %p101
      %p103 = scmp.ne.s32.totalorder %s95, %s98
      %p104 = scmp.eq.s32.totalorder %s17, 0
      %p105 = por %p103, %p104
      %p106 = scmp.ne.s32.totalorder %s95, %s98
      %p107 = scmp.eq.s32.totalorder %s22, 1
      %p108 = por %p106, %p107
      %p109 = scmp.ne.s32.totalorder %s98, %s99
      %p110 = scmp.eq.s32.totalorder %s22, 0
      %p111 = por %p109, %p110
      %p112 = scmp.ne.s32.totalorder %s98, %s99
      %p113 = scmp.eq.s32.totalorder %s23, 1
      %p114 = por %p112, %p113
      %p116 = scmp.ne.s32.totalorder %s99, %s115
      %p117 = scmp.eq.s32.totalorder %s23, 0
      %p118 = por %p116, %p117
      %s119 = ssub.s32 %s17, %s24
      %p120 = scmp.eq.s32.totalorder %s119, 0
      %s122 = sadd.s32 %s121, 1
      %s123 = scalar_select %p120, %s121, %s122
      %p126 = pneg %p120
      %p127 = scmp.eq.s32.totalorder %s17, 1
      %p128 = por %p126, %p127
      %p129 = scmp.ne.s32.totalorder %s121, %s124
      %p130 = scmp.eq.s32.totalorder %s17, 0
      %p131 = por %p129, %p130
      %p132 = scmp.ne.s32.totalorder %s121, %s124
      %p133 = scmp.eq.s32.totalorder %s22, 1
      %p134 = por %p132, %p133
      %p135 = scmp.ne.s32.totalorder %s124, %s125
      %p136 = scmp.eq.s32.totalorder %s22, 0
      %p137 = por %p135, %p136
      %p138 = scmp.ne.s32.totalorder %s124, %s125
      %p139 = scmp.eq.s32.totalorder %s23, 1
      %p140 = por %p138, %p139
      %p142 = scmp.ne.s32.totalorder %s125, %s141
      %p143 = scmp.eq.s32.totalorder %s23, 0
      %p144 = por %p142, %p143
      %p145 = scmp.le.s32.totalorder 1, %s17
      %p146 = scmp.lt.s32.totalorder %s17, 3
      %p147 = pnand %p145, %p146
      %p148 = pneg %p147
      // Predicated region
      $region9: #{tpu_custom_call.1} parent=5 // pred_check
        _
      $region10: #{tpu_custom_call.1} parent=5 // pred_check_branch
        %150 = sbr.rel (%p147) target = $region12
      $region11: #{tpu_custom_call.1} parent=5 // pred_region
        %s151 = ssub.s32 %s17, 1
        // Predicated region
        $region13: #{tpu_custom_call.1} parent=11 // pred_check
          %p152 = pneg %p64
        $region14: #{tpu_custom_call.1} parent=11 // pred_check_branch
          %154 = sbr.rel (%p152) target = $region16
        $region15: #{tpu_custom_call.1} parent=11 // pred_region
          _
        $region16: #{tpu_custom_call.1} parent=11 // pred_fallthru
          _
        // Predicated region
        $region17: #{tpu_custom_call.1} parent=11 // pred_check
          %p155 = pneg %p85
        $region18: #{tpu_custom_call.1} parent=11 // pred_check_branch
          %157 = sbr.rel (%p155) target = $region20
        $region19: #{tpu_custom_call.1} parent=11 // pred_region
          _
        $region20: #{tpu_custom_call.1} parent=11 // pred_fallthru
          _
      $region12: #{tpu_custom_call.1} parent=5 // pred_fallthru
        _
      %p158 = scmp.lt.s32.totalorder %s17, 2
      // Predicated region
      $region21: #{tpu_custom_call.1} parent=5 // pred_check
        %p159 = pneg %p158
      $region22: #{tpu_custom_call.1} parent=5 // pred_check_branch
        %161 = sbr.rel (%p159) target = $region24
      $region23: #{tpu_custom_call.1} parent=5 // pred_region
        // Predicated region
        $region25: #{tpu_custom_call.1} parent=23 // pred_check
          %p162 = pneg %p37
        $region26: #{tpu_custom_call.1} parent=23 // pred_check_branch
          %164 = sbr.rel (%p162) target = $region28
        $region27: #{tpu_custom_call.1} parent=23 // pred_region
          %s165 = smul.u32 32, %s17
          %p166 = scmp.lt.s32.totalorder %s165, 63
          %s167 = scalar_select %p166, %s165, 63
          %s168 = smul.addr %s167, 8
          %s169 = scalar_lea.vmem %s0, %s168
          %s170 = smul.u32 32, %s17
        $region28: #{tpu_custom_call.1} parent=23 // pred_fallthru
          _
      $region24: #{tpu_custom_call.1} parent=5 // pred_fallthru
        _
      %p171 = scmp.le.s32.totalorder 1, %s17
      %p172 = scmp.lt.s32.totalorder %s17, 3
      %p173 = pnand %p171, %p172
      %p174 = pneg %p173
      // Predicated region
      $region29: #{tpu_custom_call.1} parent=5 // pred_check
        _
      $region30: #{tpu_custom_call.1} parent=5 // pred_check_branch
        %176 = sbr.rel (%p173) target = $region32
      $region31: #{tpu_custom_call.1} parent=5 // pred_region
        %s177 = ssub.s32 %s17, 1
        %s178 = smul.u32 32, %s22
        %p179 = scmp.lt.s32.totalorder %s178, 63
        %s180 = scalar_select %p179, %s178, 63
        %s181 = smul.addr %s180, 8
        %s182 = scalar_lea.vmem %s0, %s181
        %p183 = pneg %p43
        %p184 = pneg %p40
        %p185 = pneg %p64
        %p186 = pneg %p61
        %p187 = pneg %p85
        %p188 = pneg %p82
        %p189 = pneg %p111
        %p190 = pneg %p108
        %s191 = sand.u32 %s98, 1
        %s192 = scalar_lea.sflag [#allocation3], %s191
        %s193 = sand.u32 %s98, 1
        %s194 = smul.addr %s193, 256
        %s195 = scalar_lea.vmem [#allocation2], %s194
        %p196 = pneg %p137
        %p197 = pneg %p134
        %s198 = sand.u32 %s124, 1
        %s199 = scalar_lea.sflag [#allocation5], %s198
        %s200 = sand.u32 %s124, 1
        %s201 = smul.addr %s200, 256
        %s202 = scalar_lea.vmem [#allocation4], %s201
        %s203 = smul.u32 32, %s22
        %p204 = scmp.lt.s32.totalorder %s203, 63
        %s205 = scalar_select %p204, %s203, 63
        %s206 = smul.addr %s205, 8
        %s207 = scalar_lea.vmem %s0, %s206
        %s208 = smul.u32 32, %s22
        %s209 = smul.u32 32, %s22
        %s210 = smul.u32 32, %s22
        %v211 = vld [vmem:[%s207] sm:$0xff]
        %v212 = vld [vmem:[%s207 + $0x8] sm:$0xff]
        %v213 = vld [vmem:[%s207 + $0x10] sm:$0xff]
        %v214 = vld [vmem:[%s207 + $0x18] sm:$0xff]
        %v215 = vld [vmem:[%s207 + $0x20] sm:$0xff]
        %v216 = vld [vmem:[%s207 + $0x28] sm:$0xff]
        %v217 = vld [vmem:[%s207 + $0x30] sm:$0xff]
        %v218 = vld [vmem:[%s207 + $0x38] sm:$0xff]
        %v219 = vld [vmem:[%s207 + $0x40] sm:$0xff]
        %v220 = vld [vmem:[%s207 + $0x48] sm:$0xff]
        %v221 = vld [vmem:[%s207 + $0x50] sm:$0xff]
        %v222 = vld [vmem:[%s207 + $0x58] sm:$0xff]
        %v223 = vld [vmem:[%s207 + $0x60] sm:$0xff]
        %v224 = vld [vmem:[%s207 + $0x68] sm:$0xff]
        %v225 = vld [vmem:[%s207 + $0x70] sm:$0xff]
        %v226 = vld [vmem:[%s207 + $0x78] sm:$0xff]
        %v227 = vld [vmem:[%s207 + $0x80] sm:$0xff]
        %v228 = vld [vmem:[%s207 + $0x88] sm:$0xff]
        %v229 = vld [vmem:[%s207 + $0x90] sm:$0xff]
        %v230 = vld [vmem:[%s207 + $0x98] sm:$0xff]
        %v231 = vld [vmem:[%s207 + $0xa0] sm:$0xff]
        %v232 = vld [vmem:[%s207 + $0xa8] sm:$0xff]
        %v233 = vld [vmem:[%s207 + $0xb0] sm:$0xff]
        %v234 = vld [vmem:[%s207 + $0xb8] sm:$0xff]
        %v235 = vld [vmem:[%s207 + $0xc0] sm:$0xff]
        %v236 = vld [vmem:[%s207 + $0xc8] sm:$0xff]
        %v237 = vld [vmem:[%s207 + $0xd0] sm:$0xff]
        %v238 = vld [vmem:[%s207 + $0xd8] sm:$0xff]
        %v239 = vld [vmem:[%s207 + $0xe0] sm:$0xff]
        %v240 = vld [vmem:[%s207 + $0xe8] sm:$0xff]
        %v241 = vld [vmem:[%s207 + $0xf0] sm:$0xff]
        %v242 = vld [vmem:[%s207 + $0xf8] sm:$0xff]
        %v243 = vld [vmem:[%s1] sm:$0xff]
        %v244 = vld [vmem:[%s1 + $0x8] sm:$0xff]
        %vm245 = vcmask 130048
        %v247 = vsel %vm245, %v211, 0
        %v250 = vsel %vm245, %v212, 0
        %v253 = vsel %vm245, %v213, 0
        %v256 = vsel %vm245, %v214, 0
        %v259 = vsel %vm245, %v215, 0
        %v262 = vsel %vm245, %v216, 0
        %v265 = vsel %vm245, %v217, 0
        %v268 = vsel %vm245, %v218, 0
        %v271 = vsel %vm245, %v219, 0
        %v274 = vsel %vm245, %v220, 0
        %v277 = vsel %vm245, %v221, 0
        %v280 = vsel %vm245, %v222, 0
        %v283 = vsel %vm245, %v223, 0
        %v286 = vsel %vm245, %v224, 0
        %v289 = vsel %vm245, %v225, 0
        %v292 = vsel %vm245, %v226, 0
        %v295 = vsel %vm245, %v227, 0
        %v298 = vsel %vm245, %v228, 0
        %v301 = vsel %vm245, %v229, 0
        %v304 = vsel %vm245, %v230, 0
        %v307 = vsel %vm245, %v231, 0
        %v310 = vsel %vm245, %v232, 0
        %v313 = vsel %vm245, %v233, 0
        %v316 = vsel %vm245, %v234, 0
        %v319 = vsel %vm245, %v235, 0
        %v322 = vsel %vm245, %v236, 0
        %v325 = vsel %vm245, %v237, 0
        %v328 = vsel %vm245, %v238, 0
        %v331 = vsel %vm245, %v239, 0
        %v334 = vsel %vm245, %v240, 0
        %v337 = vsel %vm245, %v241, 0
        %v340 = vsel %vm245, %v242, 0
        %342 = vmatpush.msra.mxu0 0.0
        %343 = vmatpush.msra.mxu0 0.0
        %344 = vmatpush.msra.mxu0 0.0
        %345 = vmatpush.msra.mxu0 0.0
        %346 = vmatpush.msra.mxu0 0.0
        %347 = vmatpush.msra.mxu0 0.0
        %348 = vmatpush.msra.mxu0 0.0
        %349 = vmatpush.msra.mxu0 0.0
        %350 = vmatpush.msra.mxu0 0.0
        %351 = vmatpush.msra.mxu0 0.0
        %352 = vmatpush.msra.mxu0 0.0
        %353 = vmatpush.msra.mxu0 0.0
        %354 = vmatpush.msra.mxu0 0.0
        %355 = vmatpush.msra.mxu0 0.0
        %356 = vmatpush.msra.mxu0 %v244
        %357 = vmatpush.msra.mxu0 %v243
        %358 = vmatmul.f32.gmra.mxu0 %v247
        %v359 = vpop.f32.mrf.mxu0
        %v360 = vadd.f32 0.0, %v359
        %361 = vmatmul.f32.gmra.mxu0 %v250
        %v362 = vpop.f32.mrf.mxu0
        %v363 = vadd.f32 0.0, %v362
        %364 = vmatmul.f32.gmra.mxu0 %v253
        %v365 = vpop.f32.mrf.mxu0
        %v366 = vadd.f32 0.0, %v365
        %367 = vmatmul.f32.gmra.mxu0 %v256
        %v368 = vpop.f32.mrf.mxu0
        %v369 = vadd.f32 0.0, %v368
        %370 = vmatmul.f32.gmra.mxu0 %v259
        %v371 = vpop.f32.mrf.mxu0
        %v372 = vadd.f32 0.0, %v371
        %373 = vmatmul.f32.gmra.mxu0 %v262
        %v374 = vpop.f32.mrf.mxu0
        %v375 = vadd.f32 0.0, %v374
        %376 = vmatmul.f32.gmra.mxu0 %v265
        %v377 = vpop.f32.mrf.mxu0
        %v378 = vadd.f32 0.0, %v377
        %379 = vmatmul.f32.gmra.mxu0 %v268
        %v380 = vpop.f32.mrf.mxu0
        %v381 = vadd.f32 0.0, %v380
        %382 = vmatmul.f32.gmra.mxu0 %v271
        %v383 = vpop.f32.mrf.mxu0
        %v384 = vadd.f32 0.0, %v383
        %385 = vmatmul.f32.gmra.mxu0 %v274
        %v386 = vpop.f32.mrf.mxu0
        %v387 = vadd.f32 0.0, %v386
        %388 = vmatmul.f32.gmra.mxu0 %v277
        %v389 = vpop.f32.mrf.mxu0
        %v390 = vadd.f32 0.0, %v389
        %391 = vmatmul.f32.gmra.mxu0 %v280
        %v392 = vpop.f32.mrf.mxu0
        %v393 = vadd.f32 0.0, %v392
        %394 = vmatmul.f32.gmra.mxu0 %v283
        %v395 = vpop.f32.mrf.mxu0
        %v396 = vadd.f32 0.0, %v395
        %397 = vmatmul.f32.gmra.mxu0 %v286
        %v398 = vpop.f32.mrf.mxu0
        %v399 = vadd.f32 0.0, %v398
        %400 = vmatmul.f32.gmra.mxu0 %v289
        %v401 = vpop.f32.mrf.mxu0
        %v402 = vadd.f32 0.0, %v401
        %403 = vmatmul.f32.gmra.mxu0 %v292
        %v404 = vpop.f32.mrf.mxu0
        %v405 = vadd.f32 0.0, %v404
        %406 = vmatmul.f32.gmra.mxu0 %v295
        %v407 = vpop.f32.mrf.mxu0
        %v408 = vadd.f32 0.0, %v407
        %409 = vmatmul.f32.gmra.mxu0 %v298
        %v410 = vpop.f32.mrf.mxu0
        %v411 = vadd.f32 0.0, %v410
        %412 = vmatmul.f32.gmra.mxu0 %v301
        %v413 = vpop.f32.mrf.mxu0
        %v414 = vadd.f32 0.0, %v413
        %415 = vmatmul.f32.gmra.mxu0 %v304
        %v416 = vpop.f32.mrf.mxu0
        %v417 = vadd.f32 0.0, %v416
        %418 = vmatmul.f32.gmra.mxu0 %v307
        %v419 = vpop.f32.mrf.mxu0
        %v420 = vadd.f32 0.0, %v419
        %421 = vmatmul.f32.gmra.mxu0 %v310
        %v422 = vpop.f32.mrf.mxu0
        %v423 = vadd.f32 0.0, %v422
        %424 = vmatmul.f32.gmra.mxu0 %v313
        %v425 = vpop.f32.mrf.mxu0
        %v426 = vadd.f32 0.0, %v425
        %427 = vmatmul.f32.gmra.mxu0 %v316
        %v428 = vpop.f32.mrf.mxu0
        %v429 = vadd.f32 0.0, %v428
        %430 = vmatmul.f32.gmra.mxu0 %v319
        %v431 = vpop.f32.mrf.mxu0
        %v432 = vadd.f32 0.0, %v431
        %433 = vmatmul.f32.gmra.mxu0 %v322
        %v434 = vpop.f32.mrf.mxu0
        %v435 = vadd.f32 0.0, %v434
        %436 = vmatmul.f32.gmra.mxu0 %v325
        %v437 = vpop.f32.mrf.mxu0
        %v438 = vadd.f32 0.0, %v437
        %439 = vmatmul.f32.gmra.mxu0 %v328
        %v440 = vpop.f32.mrf.mxu0
        %v441 = vadd.f32 0.0, %v440
        %442 = vmatmul.f32.gmra.mxu0 %v331
        %v443 = vpop.f32.mrf.mxu0
        %v444 = vadd.f32 0.0, %v443
        %445 = vmatmul.f32.gmra.mxu0 %v334
        %v446 = vpop.f32.mrf.mxu0
        %v447 = vadd.f32 0.0, %v446
        %448 = vmatmul.f32.gmra.mxu0 %v337
        %v449 = vpop.f32.mrf.mxu0
        %v450 = vadd.f32 0.0, %v449
        %451 = vmatmul.f32.gmra.mxu0 %v340
        %v452 = vpop.f32.mrf.mxu0
        %v453 = vadd.f32 0.0, %v452
        %454 = vdwg.mxu0
        %455 = vst [vmem:[%s195] sm:$0xff] %v360
        %456 = vst [vmem:[%s195 + $0x8] sm:$0xff] %v363
        %457 = vst [vmem:[%s195 + $0x10] sm:$0xff] %v366
        %458 = vst [vmem:[%s195 + $0x18] sm:$0xff] %v369
        %459 = vst [vmem:[%s195 + $0x20] sm:$0xff] %v372
        %460 = vst [vmem:[%s195 + $0x28] sm:$0xff] %v375
        %461 = vst [vmem:[%s195 + $0x30] sm:$0xff] %v378
        %462 = vst [vmem:[%s195 + $0x38] sm:$0xff] %v381
        %463 = vst [vmem:[%s195 + $0x40] sm:$0xff] %v384
        %464 = vst [vmem:[%s195 + $0x48] sm:$0xff] %v387
        %465 = vst [vmem:[%s195 + $0x50] sm:$0xff] %v390
        %466 = vst [vmem:[%s195 + $0x58] sm:$0xff] %v393
        %467 = vst [vmem:[%s195 + $0x60] sm:$0xff] %v396
        %468 = vst [vmem:[%s195 + $0x68] sm:$0xff] %v399
        %469 = vst [vmem:[%s195 + $0x70] sm:$0xff] %v402
        %470 = vst [vmem:[%s195 + $0x78] sm:$0xff] %v405
        %471 = vst [vmem:[%s195 + $0x80] sm:$0xff] %v408
        %472 = vst [vmem:[%s195 + $0x88] sm:$0xff] %v411
        %473 = vst [vmem:[%s195 + $0x90] sm:$0xff] %v414
        %474 = vst [vmem:[%s195 + $0x98] sm:$0xff] %v417
        %475 = vst [vmem:[%s195 + $0xa0] sm:$0xff] %v420
        %476 = vst [vmem:[%s195 + $0xa8] sm:$0xff] %v423
        %477 = vst [vmem:[%s195 + $0xb0] sm:$0xff] %v426
        %478 = vst [vmem:[%s195 + $0xb8] sm:$0xff] %v429
        %479 = vst [vmem:[%s195 + $0xc0] sm:$0xff] %v432
        %480 = vst [vmem:[%s195 + $0xc8] sm:$0xff] %v435
        %481 = vst [vmem:[%s195 + $0xd0] sm:$0xff] %v438
        %482 = vst [vmem:[%s195 + $0xd8] sm:$0xff] %v441
        %483 = vst [vmem:[%s195 + $0xe0] sm:$0xff] %v444
        %484 = vst [vmem:[%s195 + $0xe8] sm:$0xff] %v447
        %485 = vst [vmem:[%s195 + $0xf0] sm:$0xff] %v450
        %486 = vst [vmem:[%s195 + $0xf8] sm:$0xff] %v453
        %v487 = vld [vmem:[%s2] sm:$0xff]
        %v488 = vld [vmem:[%s2 + $0x8] sm:$0xff]
        %v489 = vld [vmem:[%s2 + $0x10] sm:$0xff]
        %v490 = vld [vmem:[%s2 + $0x18] sm:$0xff]
        %v491 = vld [vmem:[%s2 + $0x20] sm:$0xff]
        %v492 = vld [vmem:[%s2 + $0x28] sm:$0xff]
        %v493 = vld [vmem:[%s2 + $0x30] sm:$0xff]
        %v494 = vld [vmem:[%s2 + $0x38] sm:$0xff]
        %v495 = vld [vmem:[%s2 + $0x40] sm:$0xff]
        %v496 = vld [vmem:[%s2 + $0x48] sm:$0xff]
        %v497 = vld [vmem:[%s2 + $0x50] sm:$0xff]
        %v498 = vld [vmem:[%s2 + $0x58] sm:$0xff]
        %v499 = vld [vmem:[%s2 + $0x60] sm:$0xff]
        %v500 = vld [vmem:[%s2 + $0x68] sm:$0xff]
        %v501 = vld [vmem:[%s2 + $0x70] sm:$0xff]
        %v502 = vld [vmem:[%s2 + $0x78] sm:$0xff]
        %503 = vmatpush.msra.mxu0 %v502
        %504 = vmatpush.msra.mxu0 %v501
        %505 = vmatpush.msra.mxu0 %v500
        %506 = vmatpush.msra.mxu0 %v499
        %507 = vmatpush.msra.mxu0 %v498
        %508 = vmatpush.msra.mxu0 %v497
        %509 = vmatpush.msra.mxu0 %v496
        %510 = vmatpush.msra.mxu0 %v495
        %511 = vmatpush.msra.mxu0 %v494
        %512 = vmatpush.msra.mxu0 %v493
        %513 = vmatpush.msra.mxu0 %v492
        %514 = vmatpush.msra.mxu0 %v491
        %515 = vmatpush.msra.mxu0 %v490
        %516 = vmatpush.msra.mxu0 %v489
        %517 = vmatpush.msra.mxu0 %v488
        %518 = vmatpush.msra.mxu0 %v487
        %519 = vmatmul.f32.gmra.mxu0 %v360
        %v520 = vpop.f32.mrf.mxu0
        %v521 = vadd.f32 0.0, %v520
        %522 = vmatmul.f32.gmra.mxu0 %v363
        %v523 = vpop.f32.mrf.mxu0
        %v524 = vadd.f32 0.0, %v523
        %525 = vmatmul.f32.gmra.mxu0 %v366
        %v526 = vpop.f32.mrf.mxu0
        %v527 = vadd.f32 0.0, %v526
        %528 = vmatmul.f32.gmra.mxu0 %v369
        %v529 = vpop.f32.mrf.mxu0
        %v530 = vadd.f32 0.0, %v529
        %531 = vmatmul.f32.gmra.mxu0 %v372
        %v532 = vpop.f32.mrf.mxu0
        %v533 = vadd.f32 0.0, %v532
        %534 = vmatmul.f32.gmra.mxu0 %v375
        %v535 = vpop.f32.mrf.mxu0
        %v536 = vadd.f32 0.0, %v535
        %537 = vmatmul.f32.gmra.mxu0 %v378
        %v538 = vpop.f32.mrf.mxu0
        %v539 = vadd.f32 0.0, %v538
        %540 = vmatmul.f32.gmra.mxu0 %v381
        %v541 = vpop.f32.mrf.mxu0
        %v542 = vadd.f32 0.0, %v541
        %543 = vmatmul.f32.gmra.mxu0 %v384
        %v544 = vpop.f32.mrf.mxu0
        %v545 = vadd.f32 0.0, %v544
        %546 = vmatmul.f32.gmra.mxu0 %v387
        %v547 = vpop.f32.mrf.mxu0
        %v548 = vadd.f32 0.0, %v547
        %549 = vmatmul.f32.gmra.mxu0 %v390
        %v550 = vpop.f32.mrf.mxu0
        %v551 = vadd.f32 0.0, %v550
        %552 = vmatmul.f32.gmra.mxu0 %v393
        %v553 = vpop.f32.mrf.mxu0
        %v554 = vadd.f32 0.0, %v553
        %555 = vmatmul.f32.gmra.mxu0 %v396
        %v556 = vpop.f32.mrf.mxu0
        %v557 = vadd.f32 0.0, %v556
        %558 = vmatmul.f32.gmra.mxu0 %v399
        %v559 = vpop.f32.mrf.mxu0
        %v560 = vadd.f32 0.0, %v559
        %561 = vmatmul.f32.gmra.mxu0 %v402
        %v562 = vpop.f32.mrf.mxu0
        %v563 = vadd.f32 0.0, %v562
        %564 = vmatmul.f32.gmra.mxu0 %v405
        %v565 = vpop.f32.mrf.mxu0
        %v566 = vadd.f32 0.0, %v565
        %567 = vmatmul.f32.gmra.mxu0 %v408
        %v568 = vpop.f32.mrf.mxu0
        %v569 = vadd.f32 0.0, %v568
        %570 = vmatmul.f32.gmra.mxu0 %v411
        %v571 = vpop.f32.mrf.mxu0
        %v572 = vadd.f32 0.0, %v571
        %573 = vmatmul.f32.gmra.mxu0 %v414
        %v574 = vpop.f32.mrf.mxu0
        %v575 = vadd.f32 0.0, %v574
        %576 = vmatmul.f32.gmra.mxu0 %v417
        %v577 = vpop.f32.mrf.mxu0
        %v578 = vadd.f32 0.0, %v577
        %579 = vmatmul.f32.gmra.mxu0 %v420
        %v580 = vpop.f32.mrf.mxu0
        %v581 = vadd.f32 0.0, %v580
        %582 = vmatmul.f32.gmra.mxu0 %v423
        %v583 = vpop.f32.mrf.mxu0
        %v584 = vadd.f32 0.0, %v583
        %585 = vmatmul.f32.gmra.mxu0 %v426
        %v586 = vpop.f32.mrf.mxu0
        %v587 = vadd.f32 0.0, %v586
        %588 = vmatmul.f32.gmra.mxu0 %v429
        %v589 = vpop.f32.mrf.mxu0
        %v590 = vadd.f32 0.0, %v589
        %591 = vmatmul.f32.gmra.mxu0 %v432
        %v592 = vpop.f32.mrf.mxu0
        %v593 = vadd.f32 0.0, %v592
        %594 = vmatmul.f32.gmra.mxu0 %v435
        %v595 = vpop.f32.mrf.mxu0
        %v596 = vadd.f32 0.0, %v595
        %597 = vmatmul.f32.gmra.mxu0 %v438
        %v598 = vpop.f32.mrf.mxu0
        %v599 = vadd.f32 0.0, %v598
        %600 = vmatmul.f32.gmra.mxu0 %v441
        %v601 = vpop.f32.mrf.mxu0
        %v602 = vadd.f32 0.0, %v601
        %603 = vmatmul.f32.gmra.mxu0 %v444
        %v604 = vpop.f32.mrf.mxu0
        %v605 = vadd.f32 0.0, %v604
        %606 = vmatmul.f32.gmra.mxu0 %v447
        %v607 = vpop.f32.mrf.mxu0
        %v608 = vadd.f32 0.0, %v607
        %609 = vmatmul.f32.gmra.mxu0 %v450
        %v610 = vpop.f32.mrf.mxu0
        %v611 = vadd.f32 0.0, %v610
        %612 = vmatmul.f32.gmra.mxu0 %v453
        %v613 = vpop.f32.mrf.mxu0
        %v614 = vadd.f32 0.0, %v613
        %615 = vdwg.mxu0
        %616 = vst [vmem:[%s202] sm:$0xff] %v521
        %617 = vst [vmem:[%s202 + $0x8] sm:$0xff] %v524
        %618 = vst [vmem:[%s202 + $0x10] sm:$0xff] %v527
        %619 = vst [vmem:[%s202 + $0x18] sm:$0xff] %v530
        %620 = vst [vmem:[%s202 + $0x20] sm:$0xff] %v533
        %621 = vst [vmem:[%s202 + $0x28] sm:$0xff] %v536
        %622 = vst [vmem:[%s202 + $0x30] sm:$0xff] %v539
        %623 = vst [vmem:[%s202 + $0x38] sm:$0xff] %v542
        %624 = vst [vmem:[%s202 + $0x40] sm:$0xff] %v545
        %625 = vst [vmem:[%s202 + $0x48] sm:$0xff] %v548
        %626 = vst [vmem:[%s202 + $0x50] sm:$0xff] %v551
        %627 = vst [vmem:[%s202 + $0x58] sm:$0xff] %v554
        %628 = vst [vmem:[%s202 + $0x60] sm:$0xff] %v557
        %629 = vst [vmem:[%s202 + $0x68] sm:$0xff] %v560
        %630 = vst [vmem:[%s202 + $0x70] sm:$0xff] %v563
        %631 = vst [vmem:[%s202 + $0x78] sm:$0xff] %v566
        %632 = vst [vmem:[%s202 + $0x80] sm:$0xff] %v569
        %633 = vst [vmem:[%s202 + $0x88] sm:$0xff] %v572
        %634 = vst [vmem:[%s202 + $0x90] sm:$0xff] %v575
        %635 = vst [vmem:[%s202 + $0x98] sm:$0xff] %v578
        %636 = vst [vmem:[%s202 + $0xa0] sm:$0xff] %v581
        %637 = vst [vmem:[%s202 + $0xa8] sm:$0xff] %v584
        %638 = vst [vmem:[%s202 + $0xb0] sm:$0xff] %v587
        %639 = vst [vmem:[%s202 + $0xb8] sm:$0xff] %v590
        %640 = vst [vmem:[%s202 + $0xc0] sm:$0xff] %v593
        %641 = vst [vmem:[%s202 + $0xc8] sm:$0xff] %v596
        %642 = vst [vmem:[%s202 + $0xd0] sm:$0xff] %v599
        %643 = vst [vmem:[%s202 + $0xd8] sm:$0xff] %v602
        %644 = vst [vmem:[%s202 + $0xe0] sm:$0xff] %v605
        %645 = vst [vmem:[%s202 + $0xe8] sm:$0xff] %v608
        %646 = vst [vmem:[%s202 + $0xf0] sm:$0xff] %v611
        %647 = vst [vmem:[%s202 + $0xf8] sm:$0xff] %v614
        %s648 = sand.u32 %s98, 1
        %s649 = scalar_lea.sflag [#allocation3], %s648
        %s650 = sand.u32 %s98, 1
        %s651 = smul.addr %s650, 256
        %s652 = scalar_lea.vmem [#allocation2], %s651
        %s653 = sand.u32 %s124, 1
        %s654 = scalar_lea.sflag [#allocation5], %s653
        %s655 = sand.u32 %s124, 1
        %s656 = smul.addr %s655, 256
        %s657 = scalar_lea.vmem [#allocation4], %s656
        // Predicated region
        $region33: #{tpu_custom_call.1} parent=31 // pred_check
          %p658 = pneg %p108
        $region34: #{tpu_custom_call.1} parent=31 // pred_check_branch
          %660 = sbr.rel (%p658) target = $region36
        $region35: #{tpu_custom_call.1} parent=31 // pred_region
          %s661 = smul.u32 32, %s22
          %663 = vsyncadd %s649, 0
          %s664 = smul.addr %s661, 8
          %s665 = scalar_lea.hbm %s3, %s664
          %s666 = sshll.u32 %s652, 4
          %s667 = int_to_ptr.vmem [resolvable:$true] %s666
          %s668 = sshll.u32 %s665, 4
          %s669 = int_to_ptr.hbm [resolvable:$true] %s668
          %674 = dma.vmem_to_hbm [thread:$0]  %s667, 4096, %s669, %s649, 128, 128, 8
        $region36: #{tpu_custom_call.1} parent=31 // pred_fallthru
          _
        // Predicated region
        $region37: #{tpu_custom_call.1} parent=31 // pred_check
          %p675 = pneg %p134
        $region38: #{tpu_custom_call.1} parent=31 // pred_check_branch
          %677 = sbr.rel (%p675) target = $region40
        $region39: #{tpu_custom_call.1} parent=31 // pred_region
          %s678 = smul.u32 32, %s22
          %680 = vsyncadd %s654, 0
          %s681 = smul.addr %s678, 8
          %s682 = scalar_lea.hbm %s4, %s681
          %s683 = sshll.u32 %s657, 4
          %s684 = int_to_ptr.vmem [resolvable:$true] %s683
          %s685 = sshll.u32 %s682, 4
          %s686 = int_to_ptr.hbm [resolvable:$true] %s685
          %691 = dma.vmem_to_hbm [thread:$0]  %s684, 4096, %s686, %s654, 128, 128, 8
        $region40: #{tpu_custom_call.1} parent=31 // pred_fallthru
          _
      $region32: #{tpu_custom_call.1} parent=5 // pred_fallthru
        _
      %p692 = scmp.le.s32.totalorder 2, %s17
      // Predicated region
      $region41: #{tpu_custom_call.1} parent=5 // pred_check
        %p693 = pneg %p692
      $region42: #{tpu_custom_call.1} parent=5 // pred_check_branch
        %695 = sbr.rel (%p693) target = $region44
      $region43: #{tpu_custom_call.1} parent=5 // pred_region
        %s696 = ssub.s32 %s17, 2
        // Predicated region
        $region45: #{tpu_custom_call.1} parent=43 // pred_check
          %p697 = pneg %p114
        $region46: #{tpu_custom_call.1} parent=43 // pred_check_branch
          %699 = sbr.rel (%p697) target = $region48
        $region47: #{tpu_custom_call.1} parent=43 // pred_region
          %s700 = sand.u32 %s99, 1
          %s701 = scalar_lea.sflag [#allocation3], %s700
          %s702 = sand.u32 %s99, 1
          %s703 = smul.addr %s702, 256
          %s704 = scalar_lea.vmem [#allocation2], %s703
          %706 = dma.done %s701, 4096
        $region48: #{tpu_custom_call.1} parent=43 // pred_fallthru
          _
        // Predicated region
        $region49: #{tpu_custom_call.1} parent=43 // pred_check
          %p707 = pneg %p140
        $region50: #{tpu_custom_call.1} parent=43 // pred_check_branch
          %709 = sbr.rel (%p707) target = $region52
        $region51: #{tpu_custom_call.1} parent=43 // pred_region
          %s710 = sand.u32 %s125, 1
          %s711 = scalar_lea.sflag [#allocation5], %s710
          %s712 = sand.u32 %s125, 1
          %s713 = smul.addr %s712, 256
          %s714 = scalar_lea.vmem [#allocation4], %s713
          %716 = dma.done %s711, 4096
        $region52: #{tpu_custom_call.1} parent=43 // pred_fallthru
          _
      $region44: #{tpu_custom_call.1} parent=5 // pred_fallthru
        _
    $region6: #{tpu_custom_call.1} parent=1 // loop_footer
      %s21 = sadd.s32 1, %s17
    $region7: #{tpu_custom_call.1} parent=1 // loop_footer_branch
      %16 = sbr.rel target = $region3
    $region8: #{tpu_custom_call.1} parent=1 // loop_exit
      _
    %717 = vsyncpa [#allocation3], 1
    %s718 = scalar_lea.sflag [#allocation3], 1
    %719 = vsyncpa %s718, 1
    %720 = vsyncpa [#allocation5], 1
    %s721 = scalar_lea.sflag [#allocation5], 1
    %722 = vsyncpa %s721, 1

</llo_original>
